<compile_context>
chip_gen: v7x
topology: tpu7x:2x2x1
jax: 0.10.0
libtpu: 0.0.40
codegen_flags: <defaults>
</compile_context>

<pallas_src>
import jax
import jax.numpy as jnp
from jax.experimental import pallas as pl
from jax.experimental.pallas import tpu as pltpu


def _round_up(x, m):
    return (x + m - 1) // m * m


def _make_adapter_kernel(d_out_real, eps, use_skip, has_skip_proj, use_layer_norm):
    """Build the fused kernel body; all flags are trace-time Python bools."""
    inv_d = 1.0 / float(d_out_real)

    def kernel(*refs):
        out_ref = refs[-1]
        x_ref, w1_ref, b1_ref, w2_ref, b2_ref = refs[:5]
        idx = 5
        if use_skip and has_skip_proj:
            wsk_ref, bsk_ref = refs[idx], refs[idx + 1]
            idx += 2
        if use_layer_norm:
            g_ref, bt_ref = refs[idx], refs[idx + 1]

        x = x_ref[...]

        # Linear 1 + ReLU (MXU matmul, f32 accumulation, f32 elementwise).
        h = jnp.dot(x, w1_ref[...], preferred_element_type=jnp.float32)
        h = jnp.maximum(h + b1_ref[...], 0.0)
        # Dropout: eval-mode identity -> nothing emitted here.

        # Linear 2 and skip projection share one f32 accumulator.
        acc = jnp.dot(h.astype(w2_ref.dtype), w2_ref[...],
                      preferred_element_type=jnp.float32)
        acc = acc + b2_ref[...]
        if use_skip:
            if has_skip_proj:
                acc = acc + jnp.dot(x, wsk_ref[...],
                                    preferred_element_type=jnp.float32)
                acc = acc + bsk_ref[...]
            else:
                # input_dim == output_dim: identity skip, no extra matmul.
                acc = acc + x.astype(jnp.float32)

        if use_layer_norm:
            # Padded columns of acc are exactly zero, so sums over the padded
            # lane axis equal sums over the real output_dim.
            mean = jnp.sum(acc, axis=-1, keepdims=True) * inv_d
            mean_sq = jnp.sum(acc * acc, axis=-1, keepdims=True) * inv_d
            var = jnp.maximum(mean_sq - mean * mean, 0.0)
            inv_std = jax.lax.rsqrt(var + eps)
            acc = (acc - mean) * inv_std
            acc = acc * g_ref[...] + bt_ref[...]

        out_ref[...] = acc.astype(out_ref.dtype)

    return kernel


def enhanced_adapter_forward(x, params, *, use_layer_norm=True,
                             use_skip_connection=True, eps=1e-5,
                             token_tile=256, interpret=False):
    """Fused EnhancedAdapter forward.

    params (all already in (in_features, out_features) layout):
      w1 (Din, Dout), b1 (Dout,), w2 (Dout, Dout), b2 (Dout,),
      optional w_skip (Din, Dout), b_skip (Dout,),
      optional gamma (Dout,), beta (Dout,).
    """
    w1, b1, w2, b2 = params["w1"], params["b1"], params["w2"], params["b2"]
    d_in, d_out = int(w1.shape[0]), int(w1.shape[1])
    has_skip_proj = bool(use_skip_connection) and (d_in != d_out)

    orig_shape = x.shape
    assert orig_shape[-1] == d_in
    m = 1
    for s in orig_shape[:-1]:
        m *= int(s)
    x2 = x.reshape(m, d_in)

    # Lane-aligned feature padding, sublane-aligned token tiling.
    d_in_p = _round_up(d_in, 128)
    d_out_p = _round_up(d_out, 128)
    tm = min(int(token_tile), _round_up(m, 8))
    m_p = _round_up(m, tm)

    out_dtype = x.dtype
    # bf16 inputs keep the bf16 MXU path; everything else runs f32.
    mm_dtype = jnp.bfloat16 if x.dtype == jnp.bfloat16 else jnp.float32
    f32 = jnp.float32

    def pad_w(w):
        return jnp.zeros((w.shape[0] and d_in_p if w.shape[0] == d_in else d_out_p,
                          d_out_p), mm_dtype).at[:w.shape[0], :d_out].set(
                              w.astype(mm_dtype))

    def pad_vec(v):
        return jnp.zeros((1, d_out_p), f32).at[0, :d_out].set(v.astype(f32))

    x_p = jnp.zeros((m_p, d_in_p), out_dtype).at[:m, :d_in].set(x2)
    w1_p = jnp.zeros((d_in_p, d_out_p), mm_dtype).at[:d_in, :d_out].set(w1.astype(mm_dtype))
    w2_p = jnp.zeros((d_out_p, d_out_p), mm_dtype).at[:d_out, :d_out].set(w2.astype(mm_dtype))
    b1_p, b2_p = pad_vec(b1), pad_vec(b2)

    def const_spec(shape):
        return pl.BlockSpec(shape, lambda i: (0, 0))

    inputs = [x_p, w1_p, b1_p, w2_p, b2_p]
    in_specs = [
        pl.BlockSpec((tm, d_in_p), lambda i: (i, 0)),   # token tile of x
        const_spec((d_in_p, d_out_p)),                  # W1 (VMEM-resident)
        const_spec((1, d_out_p)),                       # b1
        const_spec((d_out_p, d_out_p)),                 # W2
        const_spec((1, d_out_p)),                       # b2
    ]
    if has_skip_proj:
        wsk_p = jnp.zeros((d_in_p, d_out_p), mm_dtype).at[:d_in, :d_out].set(
            params["w_skip"].astype(mm_dtype))
        bsk_p = pad_vec(params["b_skip"])
        inputs += [wsk_p, bsk_p]
        in_specs += [const_spec((d_in_p, d_out_p)), const_spec((1, d_out_p))]
    if use_layer_norm:
        inputs += [pad_vec(params["gamma"]), pad_vec(params["beta"])]
        in_specs += [const_spec((1, d_out_p)), const_spec((1, d_out_p))]

    kernel = _make_adapter_kernel(d_out, eps, use_skip_connection,
                                  has_skip_proj, use_layer_norm)

    # Rough VMEM budget: double-buffered x/out tiles + single-copy weights.
    bpe = 4
    tile_bytes = 2 * tm * (d_in_p + d_out_p) * bpe
    weight_bytes = (d_in_p * d_out_p * (2 if has_skip_proj else 1)
                    + d_out_p * d_out_p + 6 * d_out_p) * bpe
    vmem_limit = int(min(64 * 1024 * 1024,
                         max(tile_bytes + weight_bytes + (4 << 20),
                             32 * 1024 * 1024)))

    out = pl.pallas_call(
        kernel,
        out_shape=jax.ShapeDtypeStruct((m_p, d_out_p), out_dtype),
        grid_spec=pltpu.PrefetchScalarGridSpec(
            num_scalar_prefetch=0,
            grid=(m_p // tm,),
            in_specs=in_specs,
            out_specs=pl.BlockSpec((tm, d_out_p), lambda i: (i, 0)),
        ),
        compiler_params=pltpu.CompilerParams(
            dimension_semantics=("parallel",),
            vmem_limit_bytes=vmem_limit,
        ),
        interpret=interpret,
    )(*inputs)

    return out[:m, :d_out].reshape(orig_shape[:-1] + (d_out,))


# ---------------------------------------------------------------------------
# Pure-JAX reference (mirrors the PyTorch module in eval mode).
# ---------------------------------------------------------------------------
def _reference(x, params, *, use_layer_norm=True, use_skip_connection=True,
               eps=1e-5):
    w1, b1, w2, b2 = params["w1"], params["b1"], params["w2"], params["b2"]
    d_in, d_out = w1.shape
    h = jnp.maximum(x @ w1 + b1, 0.0)
    a = h @ w2 + b2
    if use_skip_connection:
        if d_in != d_out:
            a = a + x @ params["w_skip"] + params["b_skip"]
        else:
            a = a + x
    if use_layer_norm:
        mu = jnp.mean(a, axis=-1, keepdims=True)
        var = jnp.mean((a - mu) ** 2, axis=-1, keepdims=True)
        a = (a - mu) / jnp.sqrt(var + eps) * params["gamma"] + params["beta"]
    return a


def _make_params(key, d_in, d_out, need_skip_proj):
    ks = jax.random.split(key, 3)

    def xavier(k, fan_in, fan_out):
        limit = (6.0 / (fan_in + fan_out)) ** 0.5
        return jax.random.uniform(k, (fan_in, fan_out), jnp.float32,
                                  -limit, limit)

    params = {
        "w1": xavier(ks[0], d_in, d_out),
        "b1": jnp.zeros((d_out,), jnp.float32),
        "w2": xavier(ks[1], d_out, d_out),
        "b2": jnp.zeros((d_out,), jnp.float32),
        "gamma": jnp.ones((d_out,), jnp.float32),
        "beta": jnp.zeros((d_out,), jnp.float32),
    }
    if need_skip_proj:
        params["w_skip"] = xavier(ks[2], d_in, d_out)
        params["b_skip"] = jnp.zeros((d_out,), jnp.float32)
    return params


if __name__ == "__main__":
    key = jax.random.PRNGKey(0)
    kx, kx2, kp1, kp2 = jax.random.split(key, 4)

    # Case 1: input_dim != output_dim -> projected skip connection.
    batch, seq, d_in, d_out = 2, 8, 96, 64
    x = jax.random.normal(kx, (batch, seq, d_in), jnp.float32)
    params = _make_params(kp1, d_in, d_out, need_skip_proj=True)
    out = jax.block_until_ready(enhanced_adapter_forward(x, params))
    ref = _reference(x, params)
    assert out.shape == (batch, seq, d_out)
    assert jnp.allclose(out, ref, atol=2e-2, rtol=2e-2), \
        float(jnp.max(jnp.abs(out - ref)))

    # Case 2: input_dim == output_dim -> identity skip (no W_skip matmul).
    d_eq = 64
    x2 = jax.random.normal(kx2, (batch, seq, d_eq), jnp.float32)
    params2 = _make_params(kp2, d_eq, d_eq, need_skip_proj=False)
    out2 = jax.block_until_ready(enhanced_adapter_forward(x2, params2))
    ref2 = _reference(x2, params2)
    assert jnp.allclose(out2, ref2, atol=2e-2, rtol=2e-2), \
        float(jnp.max(jnp.abs(out2 - ref2)))

    print("KERNEL_OK")
</pallas_src>

<mosaic_0001>
module attributes {stable_mosaic.version = 11 : i64} {
  func.func @kernel(%arg0: i32, %arg1: memref<16x128xf32, #tpu.memory_space<vmem>>, %arg2: memref<128x128xf32, #tpu.memory_space<vmem>>, %arg3: memref<1x128xf32, #tpu.memory_space<vmem>>, %arg4: memref<128x128xf32, #tpu.memory_space<vmem>>, %arg5: memref<1x128xf32, #tpu.memory_space<vmem>>, %arg6: memref<128x128xf32, #tpu.memory_space<vmem>>, %arg7: memref<1x128xf32, #tpu.memory_space<vmem>>, %arg8: memref<1x128xf32, #tpu.memory_space<vmem>>, %arg9: memref<1x128xf32, #tpu.memory_space<vmem>>, %arg10: memref<16x128xf32, #tpu.memory_space<vmem>>) attributes {dimension_semantics = [#tpu.dimension_semantics<parallel>], iteration_bounds = array<i64: 1>, scalar_prefetch = 0 : i64, scratch_operands = 0 : i64, tpu.core_type = #tpu.core_type<tc>, window_params = [{transform_indices = @transform_0, window_bounds = array<i64: 16, 128>}, {pipeline_mode = #tpu.pipeline_mode<synchronous>, transform_indices = @transform_1, window_bounds = array<i64: 128, 128>}, {pipeline_mode = #tpu.pipeline_mode<synchronous>, transform_indices = @transform_2, window_bounds = array<i64: 1, 128>}, {pipeline_mode = #tpu.pipeline_mode<synchronous>, transform_indices = @transform_3, window_bounds = array<i64: 128, 128>}, {pipeline_mode = #tpu.pipeline_mode<synchronous>, transform_indices = @transform_4, window_bounds = array<i64: 1, 128>}, {pipeline_mode = #tpu.pipeline_mode<synchronous>, transform_indices = @transform_5, window_bounds = array<i64: 128, 128>}, {pipeline_mode = #tpu.pipeline_mode<synchronous>, transform_indices = @transform_6, window_bounds = array<i64: 1, 128>}, {pipeline_mode = #tpu.pipeline_mode<synchronous>, transform_indices = @transform_7, window_bounds = array<i64: 1, 128>}, {pipeline_mode = #tpu.pipeline_mode<synchronous>, transform_indices = @transform_8, window_bounds = array<i64: 1, 128>}, {transform_indices = @transform_9, window_bounds = array<i64: 16, 128>}]} {
    %c0 = arith.constant 0 : index
    %c0_0 = arith.constant 0 : index
    %0 = vector.load %arg1[%c0, %c0_0] : memref<16x128xf32, #tpu.memory_space<vmem>>, vector<16x128xf32>
    %c0_1 = arith.constant 0 : index
    %c0_2 = arith.constant 0 : index
    %1 = vector.load %arg2[%c0_1, %c0_2] : memref<128x128xf32, #tpu.memory_space<vmem>>, vector<128x128xf32>
    %cst = arith.constant dense<0.000000e+00> : vector<16x128xf32>
    %2 = tpu.matmul %0, %1, %cst {dimension_numbers = #tpu.dot_dimension_numbers<[1], [0], [0], [1], [0, 0, 1, 1], [], []>} : vector<16x128xf32>, vector<128x128xf32>, vector<16x128xf32> -> vector<16x128xf32>
    %c0_3 = arith.constant 0 : index
    %c0_4 = arith.constant 0 : index
    %3 = vector.load %arg3[%c0_3, %c0_4] : memref<1x128xf32, #tpu.memory_space<vmem>>, vector<1x128xf32>
    %4 = vector.broadcast %3 : vector<1x128xf32> to vector<16x128xf32>
    %5 = arith.addf %2, %4 : vector<16x128xf32>
    %cst_5 = arith.constant 0.000000e+00 : f32
    %6 = vector.broadcast %cst_5 : f32 to vector<16x128xf32>
    %7 = arith.maximumf %5, %6 : vector<16x128xf32>
    %c0_6 = arith.constant 0 : index
    %c0_7 = arith.constant 0 : index
    %8 = vector.load %arg4[%c0_6, %c0_7] : memref<128x128xf32, #tpu.memory_space<vmem>>, vector<128x128xf32>
    %cst_8 = arith.constant dense<0.000000e+00> : vector<16x128xf32>
    %9 = tpu.matmul %7, %8, %cst_8 {dimension_numbers = #tpu.dot_dimension_numbers<[1], [0], [0], [1], [0, 0, 1, 1], [], []>} : vector<16x128xf32>, vector<128x128xf32>, vector<16x128xf32> -> vector<16x128xf32>
    %c0_9 = arith.constant 0 : index
    %c0_10 = arith.constant 0 : index
    %10 = vector.load %arg5[%c0_9, %c0_10] : memref<1x128xf32, #tpu.memory_space<vmem>>, vector<1x128xf32>
    %11 = vector.broadcast %10 : vector<1x128xf32> to vector<16x128xf32>
    %12 = arith.addf %9, %11 : vector<16x128xf32>
    %c0_11 = arith.constant 0 : index
    %c0_12 = arith.constant 0 : index
    %13 = vector.load %arg6[%c0_11, %c0_12] : memref<128x128xf32, #tpu.memory_space<vmem>>, vector<128x128xf32>
    %cst_13 = arith.constant dense<0.000000e+00> : vector<16x128xf32>
    %14 = tpu.matmul %0, %13, %cst_13 {dimension_numbers = #tpu.dot_dimension_numbers<[1], [0], [0], [1], [0, 0, 1, 1], [], []>} : vector<16x128xf32>, vector<128x128xf32>, vector<16x128xf32> -> vector<16x128xf32>
    %15 = arith.addf %12, %14 : vector<16x128xf32>
    %c0_14 = arith.constant 0 : index
    %c0_15 = arith.constant 0 : index
    %16 = vector.load %arg7[%c0_14, %c0_15] : memref<1x128xf32, #tpu.memory_space<vmem>>, vector<1x128xf32>
    %17 = vector.broadcast %16 : vector<1x128xf32> to vector<16x128xf32>
    %18 = arith.addf %15, %17 : vector<16x128xf32>
    %cst_16 = arith.constant dense<0.000000e+00> : vector<16xf32>
    %19 = vector.multi_reduction <add>, %18, %cst_16 [1] : vector<16x128xf32> to vector<16xf32>
    %20 = vector.shape_cast %19 : vector<16xf32> to vector<16x1xf32>
    %cst_17 = arith.constant 1.562500e-02 : f32
    %21 = vector.broadcast %cst_17 : f32 to vector<16x1xf32>
    %22 = arith.mulf %20, %21 : vector<16x1xf32>
    %23 = arith.mulf %18, %18 : vector<16x128xf32>
    %cst_18 = arith.constant dense<0.000000e+00> : vector<16xf32>
    %24 = vector.multi_reduction <add>, %23, %cst_18 [1] : vector<16x128xf32> to vector<16xf32>
    %25 = vector.shape_cast %24 : vector<16xf32> to vector<16x1xf32>
    %cst_19 = arith.constant 1.562500e-02 : f32
    %26 = vector.broadcast %cst_19 : f32 to vector<16x1xf32>
    %27 = arith.mulf %25, %26 : vector<16x1xf32>
    %28 = arith.mulf %22, %22 : vector<16x1xf32>
    %29 = arith.subf %27, %28 : vector<16x1xf32>
    %cst_20 = arith.constant 0.000000e+00 : f32
    %30 = vector.broadcast %cst_20 : f32 to vector<16x1xf32>
    %31 = arith.maximumf %29, %30 : vector<16x1xf32>
    %cst_21 = arith.constant 9.99999974E-6 : f32
    %32 = vector.broadcast %cst_21 : f32 to vector<16x1xf32>
    %33 = arith.addf %31, %32 : vector<16x1xf32>
    %34 = math.rsqrt %33 : vector<16x1xf32>
    %35 = vector.broadcast %22 : vector<16x1xf32> to vector<16x128xf32>
    %36 = arith.subf %18, %35 : vector<16x128xf32>
    %37 = vector.broadcast %34 : vector<16x1xf32> to vector<16x128xf32>
    %38 = arith.mulf %36, %37 : vector<16x128xf32>
    %c0_22 = arith.constant 0 : index
    %c0_23 = arith.constant 0 : index
    %39 = vector.load %arg8[%c0_22, %c0_23] : memref<1x128xf32, #tpu.memory_space<vmem>>, vector<1x128xf32>
    %40 = vector.broadcast %39 : vector<1x128xf32> to vector<16x128xf32>
    %41 = arith.mulf %38, %40 : vector<16x128xf32>
    %c0_24 = arith.constant 0 : index
    %c0_25 = arith.constant 0 : index
    %42 = vector.load %arg9[%c0_24, %c0_25] : memref<1x128xf32, #tpu.memory_space<vmem>>, vector<1x128xf32>
    %43 = vector.broadcast %42 : vector<1x128xf32> to vector<16x128xf32>
    %44 = arith.addf %41, %43 : vector<16x128xf32>
    %c0_26 = arith.constant 0 : index
    %c0_27 = arith.constant 0 : index
    %45 = vector.load %arg10[%c0_26, %c0_27] : memref<16x128xf32, #tpu.memory_space<vmem>>, vector<16x128xf32>
    tpu.vector_store %arg10[%c0_26, %c0_27], %44 {strides = array<i32>} : memref<16x128xf32, #tpu.memory_space<vmem>>, vector<16x128xf32>,
    return
  }
  func.func @transform_0(%arg0: i32) -> (i32, i32) {
    %c0_i32 = arith.constant 0 : i32
    %c0_i32_0 = arith.constant 0 : i32
    return %arg0, %c0_i32 : i32, i32
  }
  func.func @transform_1(%arg0: i32) -> (i32, i32) {
    %c0_i32 = arith.constant 0 : i32
    %c0_i32_0 = arith.constant 0 : i32
    %c0_i32_1 = arith.constant 0 : i32
    return %c0_i32, %c0_i32_0 : i32, i32
  }
  func.func @transform_2(%arg0: i32) -> (i32, i32) {
    %c0_i32 = arith.constant 0 : i32
    %c0_i32_0 = arith.constant 0 : i32
    %c0_i32_1 = arith.constant 0 : i32
    return %c0_i32, %c0_i32_0 : i32, i32
  }
  func.func @transform_3(%arg0: i32) -> (i32, i32) {
    %c0_i32 = arith.constant 0 : i32
    %c0_i32_0 = arith.constant 0 : i32
    %c0_i32_1 = arith.constant 0 : i32
    return %c0_i32, %c0_i32_0 : i32, i32
  }
  func.func @transform_4(%arg0: i32) -> (i32, i32) {
    %c0_i32 = arith.constant 0 : i32
    %c0_i32_0 = arith.constant 0 : i32
    %c0_i32_1 = arith.constant 0 : i32
    return %c0_i32, %c0_i32_0 : i32, i32
  }
  func.func @transform_5(%arg0: i32) -> (i32, i32) {
    %c0_i32 = arith.constant 0 : i32
    %c0_i32_0 = arith.constant 0 : i32
    %c0_i32_1 = arith.constant 0 : i32
    return %c0_i32, %c0_i32_0 : i32, i32
  }
  func.func @transform_6(%arg0: i32) -> (i32, i32) {
    %c0_i32 = arith.constant 0 : i32
    %c0_i32_0 = arith.constant 0 : i32
    %c0_i32_1 = arith.constant 0 : i32
    return %c0_i32, %c0_i32_0 : i32, i32
  }
  func.func @transform_7(%arg0: i32) -> (i32, i32) {
    %c0_i32 = arith.constant 0 : i32
    %c0_i32_0 = arith.constant 0 : i32
    %c0_i32_1 = arith.constant 0 : i32
    return %c0_i32, %c0_i32_0 : i32, i32
  }
  func.func @transform_8(%arg0: i32) -> (i32, i32) {
    %c0_i32 = arith.constant 0 : i32
    %c0_i32_0 = arith.constant 0 : i32
    %c0_i32_1 = arith.constant 0 : i32
    return %c0_i32, %c0_i32_0 : i32, i32
  }
  func.func @transform_9(%arg0: i32) -> (i32, i32) {
    %c0_i32 = arith.constant 0 : i32
    %c0_i32_0 = arith.constant 0 : i32
    return %arg0, %c0_i32 : i32, i32
  }
}

</mosaic_0001>

<llo_original>
// kernel: tpu_custom_call.1
$region0: #{tpu_custom_call.1}
  #allocation0 [shape = 'u32[]', space=smem, size = 0x4, offset = 0x4, fixed_abs, tag = 'smem constant byte address 0x4 - core index']
  #allocation1 [shape = 'u32[144,128]{1,0:T(1,128)}', space=vmem, size = 0x12000, scoped, tag = 'internal scratch']
  %s0 = inlined_call_operand.hbm [shape: f32[16,128], index: 0, kind: input, shape index: {}]
  %s1 = inlined_call_operand.hbm [shape: f32[128,128], index: 1, kind: input, shape index: {}]
  %s2 = inlined_call_operand.vmem [shape: f32[1,128], index: 2, kind: input, shape index: {}]
  %s3 = inlined_call_operand.hbm [shape: f32[128,128], index: 3, kind: input, shape index: {}]
  %s4 = inlined_call_operand.vmem [shape: f32[1,128], index: 4, kind: input, shape index: {}]
  %s5 = inlined_call_operand.hbm [shape: f32[128,128], index: 5, kind: input, shape index: {}]
  %s6 = inlined_call_operand.vmem [shape: f32[1,128], index: 6, kind: input, shape index: {}]
  %s7 = inlined_call_operand.vmem [shape: f32[1,128], index: 7, kind: input, shape index: {}]
  %s8 = inlined_call_operand.vmem [shape: f32[1,128], index: 8, kind: input, shape index: {}]
  %s9 = inlined_call_operand.hbm [shape: f32[16,128], index: 9, kind: output, shape index: {}]
  %s10 = sld [smem:[#allocation0]]
  $region62: #{tpu_custom_call.1} parent=0
    _
  %s12 = ssub.s32 1, %s10
  %s13 = scalar_select 0, %s12, %s10
  $region1: #{tpu_custom_call.1} parent=0
    #allocation2 [shape = 'u8[8192]{0}', space=vmem, size = 0x2000, scoped, tag = 'input window, operand 0, single buffered']
    #allocation3 [shape = 's32[1]{0}', space=sflag, size = 0x4, scoped, tag = 'scoped memory for tpu_custom_call.1']
    #allocation4 [shape = 's32[1]{0}', space=sflag, size = 0x4, scoped, tag = 'scoped memory for tpu_custom_call.1']
    #allocation5 [shape = 'u8[65536]{0}', space=vmem, size = 0x10000, scoped, tag = 'input window, operand 1, single buffered']
    #allocation6 [shape = 's32[1]{0}', space=sflag, size = 0x4, scoped, tag = 'scoped memory for tpu_custom_call.1']
    #allocation7 [shape = 'u8[65536]{0}', space=vmem, size = 0x10000, scoped, tag = 'input window, operand 3, single buffered']
    #allocation8 [shape = 'u8[65536]{0}', space=vmem, size = 0x10000, scoped, tag = 'input window, operand 5, single buffered']
    #allocation9 [shape = 's32[1]{0}', space=sflag, size = 0x4, scoped, tag = 'scoped memory for tpu_custom_call.1']
    #allocation10 [shape = 'u8[8192]{0}', space=vmem, size = 0x2000, scoped, tag = 'output window, operand 0, single buffered']
    %14 = vsyncpa [#allocation3], 0
    %15 = vsyncpa [#allocation6], 0
    %16 = vsyncpa [#allocation9], 0
    %17 = vsyncpa [#allocation4], 0
    // Predicated region
    $region2: #{tpu_custom_call.1} parent=1 // pred_check
      _
    $region3: #{tpu_custom_call.1} parent=1 // pred_check_branch
      %19 = sbr.rel (0) target = $region5
    $region4: #{tpu_custom_call.1} parent=1 // pred_region
      %s21 = ssub.s32 256, 256
      %22 = vsyncadd [#allocation3], %s21
      %s23 = sshll.u32 [#allocation2], 4
      %s24 = int_to_ptr.vmem [resolvable:$true] %s23
      %29 = dma.hbm_to_vmem [thread:$0]  %s0, 256, %s24, [#allocation3], 128, 128, 8
    $region5: #{tpu_custom_call.1} parent=1 // pred_fallthru
      _
    // Predicated region
    $region6: #{tpu_custom_call.1} parent=1 // pred_check
      _
    $region7: #{tpu_custom_call.1} parent=1 // pred_check_branch
      %31 = sbr.rel (0) target = $region9
    $region8: #{tpu_custom_call.1} parent=1 // pred_region
      %s33 = ssub.s32 2048, 2048
      %34 = vsyncadd [#allocation6], %s33
      %s35 = sshll.u32 [#allocation5], 4
      %s36 = int_to_ptr.vmem [resolvable:$true] %s35
      %41 = dma.hbm_to_vmem [thread:$0]  %s1, 2048, %s36, [#allocation6], 128, 128, 8
    $region9: #{tpu_custom_call.1} parent=1 // pred_fallthru
      _
    // Predicated region
    $region10: #{tpu_custom_call.1} parent=1 // pred_check
      _
    $region11: #{tpu_custom_call.1} parent=1 // pred_check_branch
      %43 = sbr.rel (0) target = $region13
    $region12: #{tpu_custom_call.1} parent=1 // pred_region
      _
    $region13: #{tpu_custom_call.1} parent=1 // pred_fallthru
      _
    // Predicated region
    $region14: #{tpu_custom_call.1} parent=1 // pred_check
      _
    $region15: #{tpu_custom_call.1} parent=1 // pred_check_branch
      %45 = sbr.rel (0) target = $region17
    $region16: #{tpu_custom_call.1} parent=1 // pred_region
      %s47 = ssub.s32 2048, 2048
      %48 = vsyncadd [#allocation6], %s47
      %s49 = sshll.u32 [#allocation7], 4
      %s50 = int_to_ptr.vmem [resolvable:$true] %s49
      %55 = dma.hbm_to_vmem [thread:$0]  %s3, 2048, %s50, [#allocation6], 128, 128, 8
    $region17: #{tpu_custom_call.1} parent=1 // pred_fallthru
      _
    // Predicated region
    $region18: #{tpu_custom_call.1} parent=1 // pred_check
      _
    $region19: #{tpu_custom_call.1} parent=1 // pred_check_branch
      %57 = sbr.rel (0) target = $region21
    $region20: #{tpu_custom_call.1} parent=1 // pred_region
      _
    $region21: #{tpu_custom_call.1} parent=1 // pred_fallthru
      _
    // Predicated region
    $region22: #{tpu_custom_call.1} parent=1 // pred_check
      _
    $region23: #{tpu_custom_call.1} parent=1 // pred_check_branch
      %59 = sbr.rel (0) target = $region25
    $region24: #{tpu_custom_call.1} parent=1 // pred_region
      %s61 = ssub.s32 2048, 2048
      %62 = vsyncadd [#allocation9], %s61
      %s63 = sshll.u32 [#allocation8], 4
      %s64 = int_to_ptr.vmem [resolvable:$true] %s63
      %69 = dma.hbm_to_vmem [thread:$0]  %s5, 2048, %s64, [#allocation9], 128, 128, 8
    $region25: #{tpu_custom_call.1} parent=1 // pred_fallthru
      _
    // Predicated region
    $region26: #{tpu_custom_call.1} parent=1 // pred_check
      _
    $region27: #{tpu_custom_call.1} parent=1 // pred_check_branch
      %71 = sbr.rel (0) target = $region29
    $region28: #{tpu_custom_call.1} parent=1 // pred_region
      _
    $region29: #{tpu_custom_call.1} parent=1 // pred_fallthru
      _
    // Predicated region
    $region30: #{tpu_custom_call.1} parent=1 // pred_check
      _
    $region31: #{tpu_custom_call.1} parent=1 // pred_check_branch
      %73 = sbr.rel (0) target = $region33
    $region32: #{tpu_custom_call.1} parent=1 // pred_region
      _
    $region33: #{tpu_custom_call.1} parent=1 // pred_fallthru
      _
    // Predicated region
    $region34: #{tpu_custom_call.1} parent=1 // pred_check
      _
    $region35: #{tpu_custom_call.1} parent=1 // pred_check_branch
      %75 = sbr.rel (0) target = $region37
    $region36: #{tpu_custom_call.1} parent=1 // pred_region
      _
    $region37: #{tpu_custom_call.1} parent=1 // pred_fallthru
      _
    // Predicated region
    $region38: #{tpu_custom_call.1} parent=1 // pred_check
      _
    $region39: #{tpu_custom_call.1} parent=1 // pred_check_branch
      %77 = sbr.rel (0) target = $region41
    $region40: #{tpu_custom_call.1} parent=1 // pred_region
      %78 = dma.done [#allocation3], 256
    $region41: #{tpu_custom_call.1} parent=1 // pred_fallthru
      _
    // Predicated region
    $region42: #{tpu_custom_call.1} parent=1 // pred_check
      _
    $region43: #{tpu_custom_call.1} parent=1 // pred_check_branch
      %80 = sbr.rel (0) target = $region45
    $region44: #{tpu_custom_call.1} parent=1 // pred_region
      %81 = dma.done [#allocation6], 2048
    $region45: #{tpu_custom_call.1} parent=1 // pred_fallthru
      _
    // Predicated region
    $region46: #{tpu_custom_call.1} parent=1 // pred_check
      _
    $region47: #{tpu_custom_call.1} parent=1 // pred_check_branch
      %83 = sbr.rel (0) target = $region49
    $region48: #{tpu_custom_call.1} parent=1 // pred_region
      %84 = dma.done [#allocation6], 2048
    $region49: #{tpu_custom_call.1} parent=1 // pred_fallthru
      _
    // Predicated region
    $region50: #{tpu_custom_call.1} parent=1 // pred_check
      _
    $region51: #{tpu_custom_call.1} parent=1 // pred_check_branch
      %86 = sbr.rel (0) target = $region53
    $region52: #{tpu_custom_call.1} parent=1 // pred_region
      %87 = dma.done [#allocation9], 2048
    $region53: #{tpu_custom_call.1} parent=1 // pred_fallthru
      _
    %v88 = vld [vmem:[#allocation2] sm:$0xff]
    %v89 = vld [vmem:[#allocation2 + $0x8] sm:$0xff]
    %v90 = vld [vmem:[#allocation5] sm:$0xff]
    %v91 = vld [vmem:[#allocation5 + $0x8] sm:$0xff]
    %v92 = vld [vmem:[#allocation5 + $0x10] sm:$0xff]
    %v93 = vld [vmem:[#allocation5 + $0x18] sm:$0xff]
    %v94 = vld [vmem:[#allocation5 + $0x20] sm:$0xff]
    %v95 = vld [vmem:[#allocation5 + $0x28] sm:$0xff]
    %v96 = vld [vmem:[#allocation5 + $0x30] sm:$0xff]
    %v97 = vld [vmem:[#allocation5 + $0x38] sm:$0xff]
    %v98 = vld [vmem:[#allocation5 + $0x40] sm:$0xff]
    %v99 = vld [vmem:[#allocation5 + $0x48] sm:$0xff]
    %v100 = vld [vmem:[#allocation5 + $0x50] sm:$0xff]
    %v101 = vld [vmem:[#allocation5 + $0x58] sm:$0xff]
    %v102 = vld [vmem:[#allocation5 + $0x60] sm:$0xff]
    %v103 = vld [vmem:[#allocation5 + $0x68] sm:$0xff]
    %v104 = vld [vmem:[#allocation5 + $0x70] sm:$0xff]
    %v105 = vld [vmem:[#allocation5 + $0x78] sm:$0xff]
    %v106 = vld [vmem:[%s2] sm:$0x1]
    %v108 = vlaneseq
    %v109 = vshrl.u32 %v108, 7
    %v110 = vsub.s32 0, %v109
    %v111 = vrot.slane %v106, %v110
    %113 = vmatprep.subr.mxu0 0.0
    %114 = vmatpush1.msra.mxu0 %v90
    %115 = vmatprep.subr.mxu0 0.0
    %116 = vmatpush1.msra.mxu0 %v91
    %117 = vmatprep.subr.mxu0 0.0
    %118 = vmatpush1.msra.mxu0 %v92
    %119 = vmatprep.subr.mxu0 0.0
    %120 = vmatpush1.msra.mxu0 %v93
    %121 = vmatprep.subr.mxu0 0.0
    %122 = vmatpush1.msra.mxu0 %v94
    %123 = vmatprep.subr.mxu0 0.0
    %124 = vmatpush1.msra.mxu0 %v95
    %125 = vmatprep.subr.mxu0 0.0
    %126 = vmatpush1.msra.mxu0 %v96
    %127 = vmatprep.subr.mxu0 0.0
    %128 = vmatpush1.msra.mxu0 %v97
    %129 = vmatprep.subr.mxu0 0.0
    %130 = vmatpush1.msra.mxu0 %v98
    %131 = vmatprep.subr.mxu0 0.0
    %132 = vmatpush1.msra.mxu0 %v99
    %133 = vmatprep.subr.mxu0 0.0
    %134 = vmatpush1.msra.mxu0 %v100
    %135 = vmatprep.subr.mxu0 0.0
    %136 = vmatpush1.msra.mxu0 %v101
    %137 = vmatprep.subr.mxu0 0.0
    %138 = vmatpush1.msra.mxu0 %v102
    %139 = vmatprep.subr.mxu0 0.0
    %140 = vmatpush1.msra.mxu0 %v103
    %141 = vmatprep.subr.mxu0 0.0
    %142 = vmatpush1.msra.mxu0 %v104
    %143 = vmatprep.subr.mxu0 0.0
    %144 = vmatpush1.msra.mxu0 %v105
    %145 = vmatprep.subr.mxu0 0.0
    %146 = vmatpush1.msra.mxu0 0.0
    %147 = vmatprep.subr.mxu0 0.0
    %148 = vmatpush1.msra.mxu0 0.0
    %149 = vmatprep.subr.mxu0 0.0
    %150 = vmatpush1.msra.mxu0 0.0
    %151 = vmatprep.subr.mxu0 0.0
    %152 = vmatpush1.msra.mxu0 0.0
    %153 = vmatprep.subr.mxu0 0.0
    %154 = vmatpush1.msra.mxu0 0.0
    %155 = vmatprep.subr.mxu0 0.0
    %156 = vmatpush1.msra.mxu0 0.0
    %157 = vmatprep.subr.mxu0 0.0
    %158 = vmatpush1.msra.mxu0 0.0
    %159 = vmatprep.subr.mxu0 0.0
    %160 = vmatpush1.msra.mxu0 0.0
    %161 = vmatprep.subr.mxu0 0.0
    %162 = vmatpush1.msra.mxu0 0.0
    %163 = vmatprep.subr.mxu0 0.0
    %164 = vmatpush1.msra.mxu0 0.0
    %165 = vmatprep.subr.mxu0 0.0
    %166 = vmatpush1.msra.mxu0 0.0
    %167 = vmatprep.subr.mxu0 0.0
    %168 = vmatpush1.msra.mxu0 0.0
    %169 = vmatprep.subr.mxu0 0.0
    %170 = vmatpush1.msra.mxu0 0.0
    %171 = vmatprep.subr.mxu0 0.0
    %172 = vmatpush1.msra.mxu0 0.0
    %173 = vmatprep.subr.mxu0 0.0
    %174 = vmatpush1.msra.mxu0 0.0
    %175 = vmatprep.subr.mxu0 0.0
    %176 = vmatpush1.msra.mxu0 0.0
    %177 = vmatprep.mubr.f32.mxu0 0.0
    %178 = vmatmul.mubr.f32.gmra.mrb[0].mxu0 %v88
    %v179 = vpop.f32.mrb[0].mxu0
    %v180 = vadd.f32 %v111, %v179
    %v181 = vpop.f32.mrb[0].mxu0
    %182 = vmatprep.mubr.f32.mxu0 0.0
    %183 = vmatmul.mubr.f32.gmra.mrb[0].mxu0 %v89
    %v184 = vpop.f32.mrb[0].mxu0
    %v185 = vadd.f32 %v111, %v184
    %v186 = vpop.f32.mrb[0].mxu0
    %187 = vdwg.mxu0
    %v188 = vmax.f32 %v180, 0.0
    %v189 = vmax.f32 %v185, 0.0
    %v190 = vld [vmem:[#allocation7] sm:$0xff]
    %v191 = vld [vmem:[#allocation7 + $0x8] sm:$0xff]
    %v192 = vld [vmem:[#allocation7 + $0x10] sm:$0xff]
    %v193 = vld [vmem:[#allocation7 + $0x18] sm:$0xff]
    %v194 = vld [vmem:[#allocation7 + $0x20] sm:$0xff]
    %v195 = vld [vmem:[#allocation7 + $0x28] sm:$0xff]
    %v196 = vld [vmem:[#allocation7 + $0x30] sm:$0xff]
    %v197 = vld [vmem:[#allocation7 + $0x38] sm:$0xff]
    %v198 = vld [vmem:[#allocation7 + $0x40] sm:$0xff]
    %v199 = vld [vmem:[#allocation7 + $0x48] sm:$0xff]
    %v200 = vld [vmem:[#allocation7 + $0x50] sm:$0xff]
    %v201 = vld [vmem:[#allocation7 + $0x58] sm:$0xff]
    %v202 = vld [vmem:[#allocation7 + $0x60] sm:$0xff]
    %v203 = vld [vmem:[#allocation7 + $0x68] sm:$0xff]
    %v204 = vld [vmem:[#allocation7 + $0x70] sm:$0xff]
    %v205 = vld [vmem:[#allocation7 + $0x78] sm:$0xff]
    %v206 = vld [vmem:[%s4] sm:$0x1]
    %v208 = vlaneseq
    %v209 = vshrl.u32 %v208, 7
    %v210 = vsub.s32 0, %v209
    %v211 = vrot.slane %v206, %v210
    %213 = vmatprep.subr.mxu0 0.0
    %214 = vmatpush1.msra.mxu0 %v190
    %215 = vmatprep.subr.mxu0 0.0
    %216 = vmatpush1.msra.mxu0 %v191
    %217 = vmatprep.subr.mxu0 0.0
    %218 = vmatpush1.msra.mxu0 %v192
    %219 = vmatprep.subr.mxu0 0.0
    %220 = vmatpush1.msra.mxu0 %v193
    %221 = vmatprep.subr.mxu0 0.0
    %222 = vmatpush1.msra.mxu0 %v194
    %223 = vmatprep.subr.mxu0 0.0
    %224 = vmatpush1.msra.mxu0 %v195
    %225 = vmatprep.subr.mxu0 0.0
    %226 = vmatpush1.msra.mxu0 %v196
    %227 = vmatprep.subr.mxu0 0.0
    %228 = vmatpush1.msra.mxu0 %v197
    %229 = vmatprep.subr.mxu0 0.0
    %230 = vmatpush1.msra.mxu0 %v198
    %231 = vmatprep.subr.mxu0 0.0
    %232 = vmatpush1.msra.mxu0 %v199
    %233 = vmatprep.subr.mxu0 0.0
    %234 = vmatpush1.msra.mxu0 %v200
    %235 = vmatprep.subr.mxu0 0.0
    %236 = vmatpush1.msra.mxu0 %v201
    %237 = vmatprep.subr.mxu0 0.0
    %238 = vmatpush1.msra.mxu0 %v202
    %239 = vmatprep.subr.mxu0 0.0
    %240 = vmatpush1.msra.mxu0 %v203
    %241 = vmatprep.subr.mxu0 0.0
    %242 = vmatpush1.msra.mxu0 %v204
    %243 = vmatprep.subr.mxu0 0.0
    %244 = vmatpush1.msra.mxu0 %v205
    %245 = vmatprep.subr.mxu0 0.0
    %246 = vmatpush1.msra.mxu0 0.0
    %247 = vmatprep.subr.mxu0 0.0
    %248 = vmatpush1.msra.mxu0 0.0
    %249 = vmatprep.subr.mxu0 0.0
    %250 = vmatpush1.msra.mxu0 0.0
    %251 = vmatprep.subr.mxu0 0.0
    %252 = vmatpush1.msra.mxu0 0.0
    %253 = vmatprep.subr.mxu0 0.0
    %254 = vmatpush1.msra.mxu0 0.0
    %255 = vmatprep.subr.mxu0 0.0
    %256 = vmatpush1.msra.mxu0 0.0
    %257 = vmatprep.subr.mxu0 0.0
    %258 = vmatpush1.msra.mxu0 0.0
    %259 = vmatprep.subr.mxu0 0.0
    %260 = vmatpush1.msra.mxu0 0.0
    %261 = vmatprep.subr.mxu0 0.0
    %262 = vmatpush1.msra.mxu0 0.0
    %263 = vmatprep.subr.mxu0 0.0
    %264 = vmatpush1.msra.mxu0 0.0
    %265 = vmatprep.subr.mxu0 0.0
    %266 = vmatpush1.msra.mxu0 0.0
    %267 = vmatprep.subr.mxu0 0.0
    %268 = vmatpush1.msra.mxu0 0.0
    %269 = vmatprep.subr.mxu0 0.0
    %270 = vmatpush1.msra.mxu0 0.0
    %271 = vmatprep.subr.mxu0 0.0
    %272 = vmatpush1.msra.mxu0 0.0
    %273 = vmatprep.subr.mxu0 0.0
    %274 = vmatpush1.msra.mxu0 0.0
    %275 = vmatprep.subr.mxu0 0.0
    %276 = vmatpush1.msra.mxu0 0.0
    %277 = vmatprep.mubr.f32.mxu0 0.0
    %278 = vmatmul.mubr.f32.gmra.mrb[0].mxu0 %v188
    %v279 = vpop.f32.mrb[0].mxu0
    %v280 = vadd.f32 %v211, %v279
    %v281 = vpop.f32.mrb[0].mxu0
    %282 = vmatprep.mubr.f32.mxu0 0.0
    %283 = vmatmul.mubr.f32.gmra.mrb[0].mxu0 %v189
    %v284 = vpop.f32.mrb[0].mxu0
    %v285 = vadd.f32 %v211, %v284
    %v286 = vpop.f32.mrb[0].mxu0
    %287 = vdwg.mxu0
    %v288 = vld [vmem:[#allocation8] sm:$0xff]
    %v289 = vld [vmem:[#allocation8 + $0x8] sm:$0xff]
    %v290 = vld [vmem:[#allocation8 + $0x10] sm:$0xff]
    %v291 = vld [vmem:[#allocation8 + $0x18] sm:$0xff]
    %v292 = vld [vmem:[#allocation8 + $0x20] sm:$0xff]
    %v293 = vld [vmem:[#allocation8 + $0x28] sm:$0xff]
    %v294 = vld [vmem:[#allocation8 + $0x30] sm:$0xff]
    %v295 = vld [vmem:[#allocation8 + $0x38] sm:$0xff]
    %v296 = vld [vmem:[#allocation8 + $0x40] sm:$0xff]
    %v297 = vld [vmem:[#allocation8 + $0x48] sm:$0xff]
    %v298 = vld [vmem:[#allocation8 + $0x50] sm:$0xff]
    %v299 = vld [vmem:[#allocation8 + $0x58] sm:$0xff]
    %v300 = vld [vmem:[#allocation8 + $0x60] sm:$0xff]
    %v301 = vld [vmem:[#allocation8 + $0x68] sm:$0xff]
    %v302 = vld [vmem:[#allocation8 + $0x70] sm:$0xff]
    %v303 = vld [vmem:[#allocation8 + $0x78] sm:$0xff]
    %304 = vmatprep.subr.mxu0 0.0
    %305 = vmatpush1.msra.mxu0 %v288
    %306 = vmatprep.subr.mxu0 0.0
    %307 = vmatpush1.msra.mxu0 %v289
    %308 = vmatprep.subr.mxu0 0.0
    %309 = vmatpush1.msra.mxu0 %v290
    %310 = vmatprep.subr.mxu0 0.0
    %311 = vmatpush1.msra.mxu0 %v291
    %312 = vmatprep.subr.mxu0 0.0
    %313 = vmatpush1.msra.mxu0 %v292
    %314 = vmatprep.subr.mxu0 0.0
    %315 = vmatpush1.msra.mxu0 %v293
    %316 = vmatprep.subr.mxu0 0.0
    %317 = vmatpush1.msra.mxu0 %v294
    %318 = vmatprep.subr.mxu0 0.0
    %319 = vmatpush1.msra.mxu0 %v295
    %320 = vmatprep.subr.mxu0 0.0
    %321 = vmatpush1.msra.mxu0 %v296
    %322 = vmatprep.subr.mxu0 0.0
    %323 = vmatpush1.msra.mxu0 %v297
    %324 = vmatprep.subr.mxu0 0.0
    %325 = vmatpush1.msra.mxu0 %v298
    %326 = vmatprep.subr.mxu0 0.0
    %327 = vmatpush1.msra.mxu0 %v299
    %328 = vmatprep.subr.mxu0 0.0
    %329 = vmatpush1.msra.mxu0 %v300
    %330 = vmatprep.subr.mxu0 0.0
    %331 = vmatpush1.msra.mxu0 %v301
    %332 = vmatprep.subr.mxu0 0.0
    %333 = vmatpush1.msra.mxu0 %v302
    %334 = vmatprep.subr.mxu0 0.0
    %335 = vmatpush1.msra.mxu0 %v303
    %336 = vmatprep.subr.mxu0 0.0
    %337 = vmatpush1.msra.mxu0 0.0
    %338 = vmatprep.subr.mxu0 0.0
    %339 = vmatpush1.msra.mxu0 0.0
    %340 = vmatprep.subr.mxu0 0.0
    %341 = vmatpush1.msra.mxu0 0.0
    %342 = vmatprep.subr.mxu0 0.0
    %343 = vmatpush1.msra.mxu0 0.0
    %344 = vmatprep.subr.mxu0 0.0
    %345 = vmatpush1.msra.mxu0 0.0
    %346 = vmatprep.subr.mxu0 0.0
    %347 = vmatpush1.msra.mxu0 0.0
    %348 = vmatprep.subr.mxu0 0.0
    %349 = vmatpush1.msra.mxu0 0.0
    %350 = vmatprep.subr.mxu0 0.0
    %351 = vmatpush1.msra.mxu0 0.0
    %352 = vmatprep.subr.mxu0 0.0
    %353 = vmatpush1.msra.mxu0 0.0
    %354 = vmatprep.subr.mxu0 0.0
    %355 = vmatpush1.msra.mxu0 0.0
    %356 = vmatprep.subr.mxu0 0.0
    %357 = vmatpush1.msra.mxu0 0.0
    %358 = vmatprep.subr.mxu0 0.0
    %359 = vmatpush1.msra.mxu0 0.0
    %360 = vmatprep.subr.mxu0 0.0
    %361 = vmatpush1.msra.mxu0 0.0
    %362 = vmatprep.subr.mxu0 0.0
    %363 = vmatpush1.msra.mxu0 0.0
    %364 = vmatprep.subr.mxu0 0.0
    %365 = vmatpush1.msra.mxu0 0.0
    %366 = vmatprep.subr.mxu0 0.0
    %367 = vmatpush1.msra.mxu0 0.0
    %368 = vmatprep.mubr.f32.mxu0 0.0
    %369 = vmatmul.mubr.f32.gmra.mrb[0].mxu0 %v88
    %v370 = vpop.f32.mrb[0].mxu0
    %v371 = vadd.f32 0.0, %v370
    %v372 = vpop.f32.mrb[0].mxu0
    %373 = vmatprep.mubr.f32.mxu0 0.0
    %374 = vmatmul.mubr.f32.gmra.mrb[0].mxu0 %v89
    %v375 = vpop.f32.mrb[0].mxu0
    %v376 = vadd.f32 0.0, %v375
    %v377 = vpop.f32.mrb[0].mxu0
    %378 = vdwg.mxu0
    %v379 = vadd.f32 %v280, %v371
    %v380 = vadd.f32 %v285, %v376
    %v381 = vld [vmem:[%s6] sm:$0x1]
    %v383 = vlaneseq
    %v384 = vshrl.u32 %v383, 7
    %v385 = vsub.s32 0, %v384
    %v386 = vrot.slane %v381, %v385
    %v388 = vadd.f32 %v379, %v386
    %v389 = vadd.f32 %v380, %v386
    %390 = vadd.xlane.f32.xlu0 %v388
    %v391 = vpop.xlane.xlu0 %390
    %392 = vadd.xlane.f32.xlu0 %v389
    %v393 = vpop.xlane.xlu0 %392
    %v394 = vmul.f32 %v391, 0.015625
    %v395 = vmul.f32 %v393, 0.015625
    %v396 = vmul.f32 %v388, %v388
    %v397 = vmul.f32 %v389, %v389
    %398 = vadd.xlane.f32.xlu0 %v396
    %v399 = vpop.xlane.xlu0 %398
    %400 = vadd.xlane.f32.xlu0 %v397
    %v401 = vpop.xlane.xlu0 %400
    %v402 = vmul.f32 %v399, 0.015625
    %v403 = vmul.f32 %v401, 0.015625
    %v404 = vmul.f32 %v394, %v394
    %v405 = vmul.f32 %v395, %v395
    %v406 = vsub.f32 %v402, %v404
    %v407 = vsub.f32 %v403, %v405
    %v408 = vmax.f32 %v406, 0.0
    %v409 = vmax.f32 %v407, 0.0
    %v410 = vadd.f32 %v408, 1e-05
    %v411 = vadd.f32 %v409, 1e-05
    %v412 = vrsqrt.pop %v410
    %v413 = vrsqrt.pop %v411
    %v414 = vsub.f32 %v388, %v394
    %v415 = vsub.f32 %v389, %v395
    %v416 = vmul.f32 %v414, %v412
    %v417 = vmul.f32 %v415, %v413
    %v418 = vld [vmem:[%s7] sm:$0x1]
    %v420 = vlaneseq
    %v421 = vshrl.u32 %v420, 7
    %v422 = vsub.s32 0, %v421
    %v423 = vrot.slane %v418, %v422
    %v425 = vmul.f32 %v416, %v423
    %v426 = vmul.f32 %v417, %v423
    %v427 = vld [vmem:[%s8] sm:$0x1]
    %v429 = vlaneseq
    %v430 = vshrl.u32 %v429, 7
    %v431 = vsub.s32 0, %v430
    %v432 = vrot.slane %v427, %v431
    %v434 = vadd.f32 %v425, %v432
    %v435 = vadd.f32 %v426, %v432
    %436 = vst [vmem:[#allocation10] sm:$0xff] %v434
    %437 = vst [vmem:[#allocation10 + $0x8] sm:$0xff] %v435
    // Predicated region
    $region54: #{tpu_custom_call.1} parent=1 // pred_check
      _
    $region55: #{tpu_custom_call.1} parent=1 // pred_check_branch
      %439 = sbr.rel (0) target = $region57
    $region56: #{tpu_custom_call.1} parent=1 // pred_region
      %s441 = ssub.s32 256, 256
      %442 = vsyncadd [#allocation4], %s441
      %s443 = sshll.u32 [#allocation10], 4
      %s444 = int_to_ptr.vmem [resolvable:$true] %s443
      %449 = dma.vmem_to_hbm [thread:$0]  %s444, 256, %s9, [#allocation4], 128, 128, 8
    $region57: #{tpu_custom_call.1} parent=1 // pred_fallthru
      _
    // Predicated region
    $region58: #{tpu_custom_call.1} parent=1 // pred_check
      _
    $region59: #{tpu_custom_call.1} parent=1 // pred_check_branch
      %451 = sbr.rel (0) target = $region61
    $region60: #{tpu_custom_call.1} parent=1 // pred_region
      %452 = dma.done [#allocation4], 256
    $region61: #{tpu_custom_call.1} parent=1 // pred_fallthru
      _
    %453 = vsyncpa [#allocation3], 1
    %454 = vsyncpa [#allocation6], 1
    %455 = vsyncpa [#allocation9], 1
    %456 = vsyncpa [#allocation4], 1

</llo_original>
